<compile_context>
chip_gen: v5e
topology: v5e:2x2
jax: 0.10.0
libtpu: 0.0.40
codegen_flags: <defaults>
</compile_context>

<pallas_src>
import jax
import jax.numpy as jnp
from jax.experimental import pallas as pl
from jax.experimental.pallas import tpu as pltpu

H1, H2, OUT = 100, 80, 1                 # logical layer widths (PyTorch module)
H1_PAD, H2_PAD = 128, 128                # lane-dense padded hidden widths
DEFAULT_TB = 4096                        # batch tile (rows per grid step)


def _round_up(n, m):
    return (n + m - 1) // m * m


def mlp_kernel(x_ref, w1_ref, b1_ref, w2_ref, b2_ref, w3_ref, b3_ref, o_ref):
    # In-kernel bf16 cast of x (avoids a separate XLA pad/cast pass over HBM).
    x = x_ref[...].astype(jnp.bfloat16)

    # fc1 + ReLU   (dropout_fc1 == identity in eval mode)
    h1 = jnp.dot(x, w1_ref[...], preferred_element_type=jnp.float32)
    h1 = jnp.maximum(h1 + b1_ref[...], 0.0)

    # fc2 + ReLU   (dropout_fc2 == identity in eval mode)
    h2 = jnp.dot(h1.astype(jnp.bfloat16), w2_ref[...],
                 preferred_element_type=jnp.float32)
    h2 = jnp.maximum(h2 + b2_ref[...], 0.0)

    # output layer: OUT == 1 -> VPU multiply + lane reduce (XLU), f32 all the
    # way; writes a single f32 lane per row instead of a 128-lane padded slab.
    out = jnp.sum(h2 * w3_ref[...], axis=-1, keepdims=True) + b3_ref[...]
    o_ref[...] = out.astype(o_ref.dtype)


def prepare_params(params):
    """One-time weight/bias padding + bf16 cast (hoisted out of the call path).

    params: dict with pre-transposed (in, out) weights:
        w1 (IN, 100), b1 (1, 100), w2 (100, 80), b2 (1, 80), w3 (80, 1), b3 (1, 1)
    Zero padding keeps the math exact (padded lanes stay exactly 0 after ReLU).
    """
    IN = params["w1"].shape[0]
    w1 = jnp.zeros((IN, H1_PAD), jnp.bfloat16).at[:, :H1].set(
        params["w1"].astype(jnp.bfloat16))
    b1 = jnp.zeros((1, H1_PAD), jnp.float32).at[:, :H1].set(
        params["b1"].reshape(1, H1).astype(jnp.float32))
    w2 = jnp.zeros((H1_PAD, H2_PAD), jnp.bfloat16).at[:H1, :H2].set(
        params["w2"].astype(jnp.bfloat16))
    b2 = jnp.zeros((1, H2_PAD), jnp.float32).at[:, :H2].set(
        params["b2"].reshape(1, H2).astype(jnp.float32))
    # Output layer kept in f32 and stored as a row for the VPU lane-reduce.
    w3 = jnp.zeros((1, H2_PAD), jnp.float32).at[:, :H2].set(
        params["w3"].reshape(H2, OUT).astype(jnp.float32).T)
    b3 = params["b3"].reshape(1, 1).astype(jnp.float32)
    return {"w1": w1, "b1": b1, "w2": w2, "b2": b2, "w3": w3, "b3": b3}


def neural_network_model(x, prepared, *, block_b=DEFAULT_TB):
    """x: (B, input_layer) float32.  prepared: output of prepare_params()."""
    B, IN = x.shape

    # Sublane-aligned batch tile; cdiv grid so a non-multiple batch just gets a
    # partial (masked) final block — no padded copy of x is materialized.
    tb = min(block_b, _round_up(B, 8))
    grid = (pl.cdiv(B, tb),)

    flops = 2 * B * (IN * H1_PAD + H1_PAD * H2_PAD + H2_PAD)
    bytes_accessed = (
        B * IN * 4                                   # x read (f32)
        + (IN * H1_PAD + H1_PAD * H2_PAD) * 2        # bf16 weights
        + (H1_PAD + H2_PAD + H2_PAD + 1) * 4         # f32 biases + w3 row
        + B * OUT * 4                                # narrow f32 output
    )

    grid_spec = pltpu.PrefetchScalarGridSpec(
        num_scalar_prefetch=0,
        grid=grid,
        in_specs=[
            pl.BlockSpec((tb, IN), lambda i: (i, 0)),           # x tile (pipelined)
            pl.BlockSpec((IN, H1_PAD), lambda i: (0, 0)),       # w1 (resident)
            pl.BlockSpec((1, H1_PAD), lambda i: (0, 0)),        # b1 (resident)
            pl.BlockSpec((H1_PAD, H2_PAD), lambda i: (0, 0)),   # w2 (resident)
            pl.BlockSpec((1, H2_PAD), lambda i: (0, 0)),        # b2 (resident)
            pl.BlockSpec((1, H2_PAD), lambda i: (0, 0)),        # w3 row (resident)
            pl.BlockSpec((1, 1), lambda i: (0, 0)),             # b3 (resident)
        ],
        out_specs=pl.BlockSpec((tb, OUT), lambda i: (i, 0)),    # narrow output
    )

    out = pl.pallas_call(
        mlp_kernel,
        out_shape=jax.ShapeDtypeStruct((B, OUT), jnp.float32),
        grid_spec=grid_spec,
        compiler_params=pltpu.CompilerParams(
            # "parallel" lets the batch grid shard across the 2 TCs on v7x
            # (no-op on single-TC v5e/v6e).
            dimension_semantics=("parallel",),
            # Explicit 32 MiB scoped VMEM so v5e (16 MiB default) matches
            # v6e/v7x headroom; safe on all generations.
            vmem_limit_bytes=32 * 1024 * 1024,
        ),
        cost_estimate=pl.CostEstimate(
            flops=flops, transcendentals=0, bytes_accessed=bytes_accessed),
    )(x, prepared["w1"], prepared["b1"], prepared["w2"], prepared["b2"],
      prepared["w3"], prepared["b3"])

    return out


def init_params(key, input_layer):
    """Deterministic parameter init (PyTorch nn.Linear shapes, pre-transposed)."""
    k1, k2, k3, k4, k5, k6 = jax.random.split(key, 6)
    w1 = jax.random.normal(k1, (input_layer, H1), jnp.float32) * 0.05
    b1 = jax.random.normal(k2, (1, H1), jnp.float32) * 0.05
    w2 = jax.random.normal(k3, (H1, H2), jnp.float32) * 0.05
    b2 = jax.random.normal(k4, (1, H2), jnp.float32) * 0.05
    w3 = jax.random.normal(k5, (H2, OUT), jnp.float32) * 0.05
    b3 = jax.random.normal(k6, (1, OUT), jnp.float32) * 0.05
    return {"w1": w1, "b1": b1, "w2": w2, "b2": b2, "w3": w3, "b3": b3}


def reference_forward_mixed(x, params):
    """Plain-JAX reference with the same mixed-precision numerics as the kernel
    (bf16 inputs to the two MXU matmuls, f32 accumulate, f32 final layer)."""
    h1 = jnp.maximum(
        jnp.dot(x.astype(jnp.bfloat16), params["w1"].astype(jnp.bfloat16),
                preferred_element_type=jnp.float32) + params["b1"], 0.0)
    h2 = jnp.maximum(
        jnp.dot(h1.astype(jnp.bfloat16), params["w2"].astype(jnp.bfloat16),
                preferred_element_type=jnp.float32) + params["b2"], 0.0)
    return h2 @ params["w3"] + params["b3"]


def reference_forward_f32(x, params):
    """Full-precision reference matching the PyTorch forward (eval mode)."""
    h1 = jnp.maximum(x @ params["w1"] + params["b1"], 0.0)
    h2 = jnp.maximum(h1 @ params["w2"] + params["b2"], 0.0)
    return h2 @ params["w3"] + params["b3"]


if __name__ == "__main__":
    input_layer = 32
    batch = 8

    key = jax.random.PRNGKey(0)
    kx, kp = jax.random.split(key)
    x = jax.random.normal(kx, (batch, input_layer), jnp.float32)
    params = init_params(kp, input_layer)

    # Weight padding / casting happens once, outside the per-call path.
    prepared = prepare_params(params)

    fwd = jax.jit(neural_network_model)
    out = jax.block_until_ready(fwd(x, prepared))

    ref_mixed = reference_forward_mixed(x, params)
    ref_f32 = reference_forward_f32(x, params)

    assert out.shape == (batch, 1), out.shape
    assert jnp.allclose(out, ref_mixed, atol=1e-4, rtol=1e-3), \
        "mismatch vs mixed-precision reference"
    assert jnp.allclose(out, ref_f32, atol=3e-2, rtol=3e-2), \
        "mismatch vs f32 reference"

    print("KERNEL_OK")
</pallas_src>

<mosaic_0001>
module attributes {stable_mosaic.version = 11 : i64} {
  func.func @mlp_kernel(%arg0: i32, %arg1: memref<8x32xf32, #tpu.memory_space<vmem>>, %arg2: memref<32x128xbf16, #tpu.memory_space<vmem>>, %arg3: memref<1x128xf32, #tpu.memory_space<vmem>>, %arg4: memref<128x128xbf16, #tpu.memory_space<vmem>>, %arg5: memref<1x128xf32, #tpu.memory_space<vmem>>, %arg6: memref<1x128xf32, #tpu.memory_space<vmem>>, %arg7: memref<1x1xf32, #tpu.memory_space<vmem>>, %arg8: memref<8x1xf32, #tpu.memory_space<vmem>>) attributes {dimension_semantics = [#tpu.dimension_semantics<parallel>], iteration_bounds = array<i64: 1>, scalar_prefetch = 0 : i64, scratch_operands = 0 : i64, tpu.core_type = #tpu.core_type<tc>, window_params = [{transform_indices = @transform_0, window_bounds = array<i64: 8, 32>}, {pipeline_mode = #tpu.pipeline_mode<synchronous>, transform_indices = @transform_1, window_bounds = array<i64: 32, 128>}, {pipeline_mode = #tpu.pipeline_mode<synchronous>, transform_indices = @transform_2, window_bounds = array<i64: 1, 128>}, {pipeline_mode = #tpu.pipeline_mode<synchronous>, transform_indices = @transform_3, window_bounds = array<i64: 128, 128>}, {pipeline_mode = #tpu.pipeline_mode<synchronous>, transform_indices = @transform_4, window_bounds = array<i64: 1, 128>}, {pipeline_mode = #tpu.pipeline_mode<synchronous>, transform_indices = @transform_5, window_bounds = array<i64: 1, 128>}, {pipeline_mode = #tpu.pipeline_mode<synchronous>, transform_indices = @transform_6, window_bounds = array<i64: 1, 1>}, {transform_indices = @transform_7, window_bounds = array<i64: 8, 1>}]} {
    %c0 = arith.constant 0 : index
    %c0_0 = arith.constant 0 : index
    %0 = vector.load %arg1[%c0, %c0_0] : memref<8x32xf32, #tpu.memory_space<vmem>>, vector<8x32xf32>
    %1 = arith.truncf %0 : vector<8x32xf32> to vector<8x32xbf16>
    %c0_1 = arith.constant 0 : index
    %c0_2 = arith.constant 0 : index
    %2 = vector.load %arg2[%c0_1, %c0_2] : memref<32x128xbf16, #tpu.memory_space<vmem>>, vector<32x128xbf16>
    %cst = arith.constant dense<0.000000e+00> : vector<8x128xf32>
    %3 = tpu.matmul %1, %2, %cst {dimension_numbers = #tpu.dot_dimension_numbers<[1], [0], [0], [1], [0, 0, 1, 1], [], []>} : vector<8x32xbf16>, vector<32x128xbf16>, vector<8x128xf32> -> vector<8x128xf32>
    %c0_3 = arith.constant 0 : index
    %c0_4 = arith.constant 0 : index
    %4 = vector.load %arg3[%c0_3, %c0_4] : memref<1x128xf32, #tpu.memory_space<vmem>>, vector<1x128xf32>
    %5 = vector.broadcast %4 : vector<1x128xf32> to vector<8x128xf32>
    %6 = arith.addf %3, %5 : vector<8x128xf32>
    %cst_5 = arith.constant 0.000000e+00 : f32
    %7 = vector.broadcast %cst_5 : f32 to vector<8x128xf32>
    %8 = arith.maximumf %6, %7 : vector<8x128xf32>
    %9 = arith.truncf %8 : vector<8x128xf32> to vector<8x128xbf16>
    %c0_6 = arith.constant 0 : index
    %c0_7 = arith.constant 0 : index
    %10 = vector.load %arg4[%c0_6, %c0_7] : memref<128x128xbf16, #tpu.memory_space<vmem>>, vector<128x128xbf16>
    %cst_8 = arith.constant dense<0.000000e+00> : vector<8x128xf32>
    %11 = tpu.matmul %9, %10, %cst_8 {dimension_numbers = #tpu.dot_dimension_numbers<[1], [0], [0], [1], [0, 0, 1, 1], [], []>} : vector<8x128xbf16>, vector<128x128xbf16>, vector<8x128xf32> -> vector<8x128xf32>
    %c0_9 = arith.constant 0 : index
    %c0_10 = arith.constant 0 : index
    %12 = vector.load %arg5[%c0_9, %c0_10] : memref<1x128xf32, #tpu.memory_space<vmem>>, vector<1x128xf32>
    %13 = vector.broadcast %12 : vector<1x128xf32> to vector<8x128xf32>
    %14 = arith.addf %11, %13 : vector<8x128xf32>
    %cst_11 = arith.constant 0.000000e+00 : f32
    %15 = vector.broadcast %cst_11 : f32 to vector<8x128xf32>
    %16 = arith.maximumf %14, %15 : vector<8x128xf32>
    %c0_12 = arith.constant 0 : index
    %c0_13 = arith.constant 0 : index
    %17 = vector.load %arg6[%c0_12, %c0_13] : memref<1x128xf32, #tpu.memory_space<vmem>>, vector<1x128xf32>
    %18 = vector.broadcast %17 : vector<1x128xf32> to vector<8x128xf32>
    %19 = arith.mulf %16, %18 : vector<8x128xf32>
    %cst_14 = arith.constant dense<0.000000e+00> : vector<8xf32>
    %20 = vector.multi_reduction <add>, %19, %cst_14 [1] : vector<8x128xf32> to vector<8xf32>
    %21 = vector.shape_cast %20 : vector<8xf32> to vector<8x1xf32>
    %c0_15 = arith.constant 0 : index
    %c0_16 = arith.constant 0 : index
    %22 = vector.load %arg7[%c0_15, %c0_16] : memref<1x1xf32, #tpu.memory_space<vmem>>, vector<1x1xf32>
    %23 = vector.broadcast %22 : vector<1x1xf32> to vector<8x1xf32>
    %24 = arith.addf %21, %23 : vector<8x1xf32>
    %c0_17 = arith.constant 0 : index
    %c0_18 = arith.constant 0 : index
    %25 = vector.load %arg8[%c0_17, %c0_18] : memref<8x1xf32, #tpu.memory_space<vmem>>, vector<8x1xf32>
    tpu.vector_store %arg8[%c0_17, %c0_18], %24 {strides = array<i32>} : memref<8x1xf32, #tpu.memory_space<vmem>>, vector<8x1xf32>,
    return
  }
  func.func @transform_0(%arg0: i32) -> (i32, i32) {
    %c0_i32 = arith.constant 0 : i32
    %c0_i32_0 = arith.constant 0 : i32
    return %arg0, %c0_i32 : i32, i32
  }
  func.func @transform_1(%arg0: i32) -> (i32, i32) {
    %c0_i32 = arith.constant 0 : i32
    %c0_i32_0 = arith.constant 0 : i32
    %c0_i32_1 = arith.constant 0 : i32
    return %c0_i32, %c0_i32_0 : i32, i32
  }
  func.func @transform_2(%arg0: i32) -> (i32, i32) {
    %c0_i32 = arith.constant 0 : i32
    %c0_i32_0 = arith.constant 0 : i32
    %c0_i32_1 = arith.constant 0 : i32
    return %c0_i32, %c0_i32_0 : i32, i32
  }
  func.func @transform_3(%arg0: i32) -> (i32, i32) {
    %c0_i32 = arith.constant 0 : i32
    %c0_i32_0 = arith.constant 0 : i32
    %c0_i32_1 = arith.constant 0 : i32
    return %c0_i32, %c0_i32_0 : i32, i32
  }
  func.func @transform_4(%arg0: i32) -> (i32, i32) {
    %c0_i32 = arith.constant 0 : i32
    %c0_i32_0 = arith.constant 0 : i32
    %c0_i32_1 = arith.constant 0 : i32
    return %c0_i32, %c0_i32_0 : i32, i32
  }
  func.func @transform_5(%arg0: i32) -> (i32, i32) {
    %c0_i32 = arith.constant 0 : i32
    %c0_i32_0 = arith.constant 0 : i32
    %c0_i32_1 = arith.constant 0 : i32
    return %c0_i32, %c0_i32_0 : i32, i32
  }
  func.func @transform_6(%arg0: i32) -> (i32, i32) {
    %c0_i32 = arith.constant 0 : i32
    %c0_i32_0 = arith.constant 0 : i32
    %c0_i32_1 = arith.constant 0 : i32
    return %c0_i32, %c0_i32_0 : i32, i32
  }
  func.func @transform_7(%arg0: i32) -> (i32, i32) {
    %c0_i32 = arith.constant 0 : i32
    %c0_i32_0 = arith.constant 0 : i32
    return %arg0, %c0_i32 : i32, i32
  }
}

</mosaic_0001>

<llo_original>
// kernel: neural_network_model.1
$region0: #{neural_network_model.1}
  #allocation0 [shape = 'u32[]', space=smem, size = 0x4, offset = 0x4, fixed_abs, tag = 'smem constant byte address 0x4 - core index']
  #allocation1 [shape = 'u32[72,128]{1,0:T(1,128)}', space=vmem, size = 0x9000, scoped, tag = 'internal scratch']
  #allocation2 [shape = 'f32[1,1]{1,0:T(1,128)S(1)}', space=vmem, size = 0x200, scoped, tag = 'scoped memory for neural_network_model.1']
  %s0 = inlined_call_operand.hbm [shape: f32[8,32], index: 0, kind: input, shape index: {}]
  %s1 = inlined_call_operand.hbm [shape: bf16[32,128], index: 1, kind: input, shape index: {}]
  %s2 = inlined_call_operand.vmem [shape: f32[1,128], index: 2, kind: input, shape index: {}]
  %s3 = inlined_call_operand.hbm [shape: bf16[128,128], index: 3, kind: input, shape index: {}]
  %s4 = inlined_call_operand.vmem [shape: f32[1,128], index: 4, kind: input, shape index: {}]
  %s5 = inlined_call_operand.vmem [shape: f32[1,128], index: 5, kind: input, shape index: {}]
  %s6 = inlined_call_operand.<no memory space> [shape: f32[1,1], index: 6, kind: input, shape index: {}]
  %s7 = inlined_call_operand.vmem [shape: f32[8,1], index: 7, kind: output, shape index: {}]
  %s8 = sld [smem:[#allocation0]]
  $region50: #{neural_network_model.1} parent=0
    _
  %s10 = ssub.s32 1, %s8
  %s11 = scalar_select 0, %s10, %s8
  %v12 = vstv %s6
  %13 = vst [vmem:[#allocation2] sm:$0x1] %v12
  $region1: #{neural_network_model.1} parent=0
    #allocation3 [shape = 'u8[4096]{0}', space=vmem, size = 0x1000, scoped, tag = 'input window, operand 0, single buffered']
    #allocation4 [shape = 's32[1]{0}', space=sflag, size = 0x4, scoped, tag = 'scoped memory for neural_network_model.1']
    #allocation5 [shape = 'u8[8192]{0}', space=vmem, size = 0x2000, scoped, tag = 'input window, operand 1, single buffered']
    #allocation6 [shape = 's32[1]{0}', space=sflag, size = 0x4, scoped, tag = 'scoped memory for neural_network_model.1']
    #allocation7 [shape = 'u8[32768]{0}', space=vmem, size = 0x8000, scoped, tag = 'input window, operand 3, single buffered']
    %14 = vsyncpa [#allocation4], 0
    %15 = vsyncpa [#allocation6], 0
    // Predicated region
    $region2: #{neural_network_model.1} parent=1 // pred_check
      _
    $region3: #{neural_network_model.1} parent=1 // pred_check_branch
      %17 = sbr.rel (0) target = $region5
    $region4: #{neural_network_model.1} parent=1 // pred_region
      %19 = vsyncadd [#allocation4], 0
      %s21 = sshll.u32 %s0, 4
      %s22 = int_to_ptr.hbm [resolvable:$true] %s21
      %s23 = sshll.u32 [#allocation3], 4
      %s24 = int_to_ptr.vmem [resolvable:$true] %s23
      %26 = dma.hbm_to_vmem [thread:$0]  %s22, 128, %s24, [#allocation4]
    $region5: #{neural_network_model.1} parent=1 // pred_fallthru
      _
    // Predicated region
    $region6: #{neural_network_model.1} parent=1 // pred_check
      _
    $region7: #{neural_network_model.1} parent=1 // pred_check_branch
      %28 = sbr.rel (0) target = $region9
    $region8: #{neural_network_model.1} parent=1 // pred_region
      %30 = vsyncadd [#allocation6], 0
      %s31 = sshll.u32 %s1, 4
      %s32 = int_to_ptr.hbm [resolvable:$true] %s31
      %s33 = sshll.u32 [#allocation5], 4
      %s34 = int_to_ptr.vmem [resolvable:$true] %s33
      %39 = dma.hbm_to_vmem [thread:$0]  %s32, 256, %s34, [#allocation6], 64, 64, 4
    $region9: #{neural_network_model.1} parent=1 // pred_fallthru
      _
    // Predicated region
    $region10: #{neural_network_model.1} parent=1 // pred_check
      _
    $region11: #{neural_network_model.1} parent=1 // pred_check_branch
      %41 = sbr.rel (0) target = $region13
    $region12: #{neural_network_model.1} parent=1 // pred_region
      _
    $region13: #{neural_network_model.1} parent=1 // pred_fallthru
      _
    // Predicated region
    $region14: #{neural_network_model.1} parent=1 // pred_check
      _
    $region15: #{neural_network_model.1} parent=1 // pred_check_branch
      %43 = sbr.rel (0) target = $region17
    $region16: #{neural_network_model.1} parent=1 // pred_region
      %45 = vsyncadd [#allocation6], 0
      %s46 = sshll.u32 %s3, 4
      %s47 = int_to_ptr.hbm [resolvable:$true] %s46
      %s48 = sshll.u32 [#allocation7], 4
      %s49 = int_to_ptr.vmem [resolvable:$true] %s48
      %54 = dma.hbm_to_vmem [thread:$0]  %s47, 1024, %s49, [#allocation6], 64, 64, 4
    $region17: #{neural_network_model.1} parent=1 // pred_fallthru
      _
    // Predicated region
    $region18: #{neural_network_model.1} parent=1 // pred_check
      _
    $region19: #{neural_network_model.1} parent=1 // pred_check_branch
      %56 = sbr.rel (0) target = $region21
    $region20: #{neural_network_model.1} parent=1 // pred_region
      _
    $region21: #{neural_network_model.1} parent=1 // pred_fallthru
      _
    // Predicated region
    $region22: #{neural_network_model.1} parent=1 // pred_check
      _
    $region23: #{neural_network_model.1} parent=1 // pred_check_branch
      %58 = sbr.rel (0) target = $region25
    $region24: #{neural_network_model.1} parent=1 // pred_region
      _
    $region25: #{neural_network_model.1} parent=1 // pred_fallthru
      _
    // Predicated region
    $region26: #{neural_network_model.1} parent=1 // pred_check
      _
    $region27: #{neural_network_model.1} parent=1 // pred_check_branch
      %60 = sbr.rel (0) target = $region29
    $region28: #{neural_network_model.1} parent=1 // pred_region
      _
    $region29: #{neural_network_model.1} parent=1 // pred_fallthru
      _
    // Predicated region
    $region30: #{neural_network_model.1} parent=1 // pred_check
      _
    $region31: #{neural_network_model.1} parent=1 // pred_check_branch
      %62 = sbr.rel (0) target = $region33
    $region32: #{neural_network_model.1} parent=1 // pred_region
      %64 = dma.done [#allocation4], 128
    $region33: #{neural_network_model.1} parent=1 // pred_fallthru
      _
    // Predicated region
    $region34: #{neural_network_model.1} parent=1 // pred_check
      _
    $region35: #{neural_network_model.1} parent=1 // pred_check_branch
      %66 = sbr.rel (0) target = $region37
    $region36: #{neural_network_model.1} parent=1 // pred_region
      %68 = dma.done [#allocation6], 256
    $region37: #{neural_network_model.1} parent=1 // pred_fallthru
      _
    // Predicated region
    $region38: #{neural_network_model.1} parent=1 // pred_check
      _
    $region39: #{neural_network_model.1} parent=1 // pred_check_branch
      %70 = sbr.rel (0) target = $region41
    $region40: #{neural_network_model.1} parent=1 // pred_region
      %72 = dma.done [#allocation6], 1024
    $region41: #{neural_network_model.1} parent=1 // pred_fallthru
      _
    %v74 = vld [vmem:[#allocation3] sm:$0xff]
    %v75 = vpack.c.bf16 %v74, %v74
    %v76 = vld [vmem:[#allocation5] sm:$0xf]
    %v77 = vld [vmem:[#allocation5 + $0x4] sm:$0xf]
    %v78 = vld [vmem:[#allocation5 + $0x8] sm:$0xf]
    %v79 = vld [vmem:[#allocation5 + $0xc] sm:$0xf]
    %v80 = vld [vmem:[%s2] sm:$0x1]
    %v82 = vperm.slane %v80, 0
    %v88 = vunpack.c.l.b16 %v76
    %v89 = vunpack.c.l.b16 %v77
    %v90 = vunpack.c.l.b16 %v78
    %v91 = vunpack.c.l.b16 %v79
    %v92 = vpack.c.b16 %v89, %v88
    %v93 = vpack.c.b16 %v91, %v90
    %vm96 = vcmask 261120
    %v98 = vsel %vm96, %v75, 0
    %100 = vmatpush.bf16.msra.mxu0 0
    %101 = vmatpush.bf16.msra.mxu0 0
    %102 = vmatpush.bf16.msra.mxu0 0
    %103 = vmatpush.bf16.msra.mxu0 0
    %104 = vmatpush.bf16.msra.mxu0 0
    %105 = vmatpush.bf16.msra.mxu0 0
    %106 = vmatpush.bf16.msra.mxu0 %v93
    %107 = vmatpush.bf16.msra.mxu0 %v92
    %108 = vmatmul.bf16.gmra.mxu0 %v98
    %v109 = vpop.f32.mrf.mxu0
    %v110 = vadd.f32 %v82, %v109
    %v111 = vpop.f32.mrf.mxu0
    %112 = vdwg.mxu0
    %v113 = vmax.f32 %v110, 0.0
    %v114 = vpack.c.bf16 %v113, %v113
    %v115 = vld [vmem:[#allocation7] sm:$0xf]
    %v116 = vld [vmem:[#allocation7 + $0x4] sm:$0xf]
    %v117 = vld [vmem:[#allocation7 + $0x8] sm:$0xf]
    %v118 = vld [vmem:[#allocation7 + $0xc] sm:$0xf]
    %v119 = vld [vmem:[#allocation7 + $0x10] sm:$0xf]
    %v120 = vld [vmem:[#allocation7 + $0x14] sm:$0xf]
    %v121 = vld [vmem:[#allocation7 + $0x18] sm:$0xf]
    %v122 = vld [vmem:[#allocation7 + $0x1c] sm:$0xf]
    %v123 = vld [vmem:[#allocation7 + $0x20] sm:$0xf]
    %v124 = vld [vmem:[#allocation7 + $0x24] sm:$0xf]
    %v125 = vld [vmem:[#allocation7 + $0x28] sm:$0xf]
    %v126 = vld [vmem:[#allocation7 + $0x2c] sm:$0xf]
    %v127 = vld [vmem:[#allocation7 + $0x30] sm:$0xf]
    %v128 = vld [vmem:[#allocation7 + $0x34] sm:$0xf]
    %v129 = vld [vmem:[#allocation7 + $0x38] sm:$0xf]
    %v130 = vld [vmem:[#allocation7 + $0x3c] sm:$0xf]
    %v131 = vld [vmem:[%s4] sm:$0x1]
    %v133 = vperm.slane %v131, 0
    %v151 = vunpack.c.l.b16 %v115
    %v152 = vunpack.c.l.b16 %v116
    %v153 = vunpack.c.l.b16 %v117
    %v154 = vunpack.c.l.b16 %v118
    %v155 = vunpack.c.l.b16 %v119
    %v156 = vunpack.c.l.b16 %v120
    %v157 = vunpack.c.l.b16 %v121
    %v158 = vunpack.c.l.b16 %v122
    %v159 = vunpack.c.l.b16 %v123
    %v160 = vunpack.c.l.b16 %v124
    %v161 = vunpack.c.l.b16 %v125
    %v162 = vunpack.c.l.b16 %v126
    %v163 = vunpack.c.l.b16 %v127
    %v164 = vunpack.c.l.b16 %v128
    %v165 = vunpack.c.l.b16 %v129
    %v166 = vunpack.c.l.b16 %v130
    %v167 = vpack.c.b16 %v152, %v151
    %v168 = vpack.c.b16 %v154, %v153
    %v169 = vpack.c.b16 %v156, %v155
    %v170 = vpack.c.b16 %v158, %v157
    %v171 = vpack.c.b16 %v160, %v159
    %v172 = vpack.c.b16 %v162, %v161
    %v173 = vpack.c.b16 %v164, %v163
    %v174 = vpack.c.b16 %v166, %v165
    %183 = vmatpush.bf16.msra.mxu0 %v174
    %184 = vmatpush.bf16.msra.mxu0 %v173
    %185 = vmatpush.bf16.msra.mxu0 %v172
    %186 = vmatpush.bf16.msra.mxu0 %v171
    %187 = vmatpush.bf16.msra.mxu0 %v170
    %188 = vmatpush.bf16.msra.mxu0 %v169
    %189 = vmatpush.bf16.msra.mxu0 %v168
    %190 = vmatpush.bf16.msra.mxu0 %v167
    %191 = vmatmul.bf16.gmra.mxu0 %v114
    %v192 = vpop.f32.mrf.mxu0
    %v193 = vadd.f32 %v133, %v192
    %v194 = vpop.f32.mrf.mxu0
    %195 = vdwg.mxu0
    %v196 = vmax.f32 %v193, 0.0
    %v197 = vld [vmem:[%s5] sm:$0x1]
    %v199 = vperm.slane %v197, 0
    %v201 = vmul.f32 %v196, %v199
    %202 = vadd.xlane.f32.xlu0 %v201
    %v203 = vpop.xlane.xlu0 %202
    %v204 = vld [vmem:[#allocation2] sm:$0x1]
    %v206 = vperm.slane %v204, 0
    %v208 = vadd.f32 %v203, %v206
    %vm209 = vcmask 7168
    %210 = vst.msk [vmem:[%s7] sm:$0xff] %vm209, %v208
    // Predicated region
    $region42: #{neural_network_model.1} parent=1 // pred_check
      _
    $region43: #{neural_network_model.1} parent=1 // pred_check_branch
      %212 = sbr.rel (0) target = $region45
    $region44: #{neural_network_model.1} parent=1 // pred_region
      _
    $region45: #{neural_network_model.1} parent=1 // pred_fallthru
      _
    // Predicated region
    $region46: #{neural_network_model.1} parent=1 // pred_check
      _
    $region47: #{neural_network_model.1} parent=1 // pred_check_branch
      %214 = sbr.rel (0) target = $region49
    $region48: #{neural_network_model.1} parent=1 // pred_region
      _
    $region49: #{neural_network_model.1} parent=1 // pred_fallthru
      _
    %215 = vsyncpa [#allocation4], 1
    %216 = vsyncpa [#allocation6], 1

</llo_original>
